<compile_context>
chip_gen: v5e
topology: v5e:2x2
jax: 0.10.0
libtpu: 0.0.40
codegen_flags: <defaults>
</compile_context>

<pallas_src>
import functools

import numpy as np
import jax
import jax.numpy as jnp
from jax.experimental import pallas as pl
from jax.experimental.pallas import tpu as pltpu


def _organelle_kernel(avg_ref, num_ref, vol_ref, alpha_ref, rsel_ref, ssel_ref,
                      wlin_ref, wbil_ref, c_ref, out_ref, *, use_pow):
    avg = avg_ref[...]                                   # (blk, n_in)
    num = num_ref[...]                                   # (blk, n_in)
    inv_vol = pl.reciprocal(vol_ref[...], approx=False)  # (blk, 1); approx=True ok if tol allows

    if use_pow:
        # torch.pow(average, alpha) for positive base == exp(alpha * log(average))
        powered = jnp.exp(alpha_ref[...] * jnp.log(avg))
    else:
        # alpha == 1 fast path: skip both transcendentals.
        powered = avg

    org = num * powered * inv_vol                        # (blk, n_in)

    # Flattened outer product: outer_flat[b, i*n_in + j] = org[b,i] * org[b,j].
    # Built with two tiny 0/1 "selection" matmuls (lane-dense, exact), avoiding
    # any per-i lane extraction, in-kernel reshape, or concat.
    rep_i = jnp.dot(org, rsel_ref[...], preferred_element_type=jnp.float32)
    rep_j = jnp.dot(org, ssel_ref[...], preferred_element_type=jnp.float32)
    outer_flat = rep_i * rep_j                           # (blk, n_in*n_in)

    # Fused linear + bilinear head against lane-dense (padded to 128) weights.
    raw = jnp.dot(org, wlin_ref[...], preferred_element_type=jnp.float32)
    raw = raw + jnp.dot(outer_flat, wbil_ref[...], preferred_element_type=jnp.float32)

    # Lane-dense (128-multiple) unmasked store.
    out_ref[...] = raw + c_ref[...]


def organelle_classifier(x, A, B, C, alpha, *, block_batch=512):
    batch = x.shape[0]
    n_output, n_input = A.shape
    assert x.shape[1] == 2 * n_input + 1

    # --- split x into lane-aligned operands (free XLA slices, outside kernel) ---
    average = x[:, :n_input].astype(jnp.float32)
    numbers = x[:, n_input:2 * n_input].astype(jnp.float32)   # == x[:, -n_input-1:-1]
    # TODO(synk): source uses `cellvol = x[-1]` (last ROW), which cannot broadcast
    # against (batch, n_input); we use the per-sample last column, the only
    # broadcast-consistent reading.
    cellvol = x[:, 2 * n_input:2 * n_input + 1].astype(jnp.float32)

    # --- batch tiling: pad rows to a multiple of the block (sublane mult. of 8) ---
    blk = max(8, min(int(block_batch), pl.cdiv(batch, 8) * 8))
    blk = (blk // 8) * 8
    padded = pl.cdiv(batch, blk) * blk

    def pad_rows(a, value):
        extra = padded - a.shape[0]
        if extra == 0:
            return a
        return jnp.concatenate(
            [a, jnp.full((extra,) + a.shape[1:], value, a.dtype)], axis=0)

    average = pad_rows(average, 1.0)   # log-safe padding; padded rows sliced off
    numbers = pad_rows(numbers, 0.0)
    cellvol = pad_rows(cellvol, 1.0)

    # --- lane-dense fused head weights (padded to a 128-lane multiple) ---
    n_out_pad = pl.cdiv(n_output, 128) * 128
    w_lin = jnp.zeros((n_input, n_out_pad), jnp.float32).at[:, :n_output].set(
        jnp.asarray(A, jnp.float32).T)
    # w_bil[i*n_in + j, o] = B[i, o, j]
    b_flat = jnp.transpose(jnp.asarray(B, jnp.float32), (0, 2, 1)).reshape(
        n_input * n_input, n_output)
    w_bil = jnp.zeros((n_input * n_input, n_out_pad), jnp.float32).at[:, :n_output].set(b_flat)
    c_pad = jnp.zeros((1, n_out_pad), jnp.float32).at[0, :n_output].set(
        jnp.asarray(C, jnp.float32))
    alpha2d = jnp.asarray(alpha, jnp.float32).reshape(1, n_input)

    # Selection matrices building the flattened outer product on the MXU:
    #   (org @ rsel)[b, i*n_in + j] = org[b, i]
    #   (org @ ssel)[b, i*n_in + j] = org[b, j]
    eye = np.eye(n_input, dtype=np.float32)
    rsel = jnp.asarray(np.repeat(eye, n_input, axis=1))   # (n_in, n_in*n_in)
    ssel = jnp.asarray(np.tile(eye, (1, n_input)))        # (n_in, n_in*n_in)

    # Trace-time fast path: skip pow entirely when alpha is concretely all ones
    # (the module's default init). pow(x, 1) == x for positive x, so semantics match.
    use_pow = True
    try:
        use_pow = not bool(np.all(np.asarray(alpha) == 1.0))
    except Exception:   # traced alpha (e.g. under jit) -> keep the general path
        use_pow = True

    grid = (padded // blk,)
    row_spec = lambda w: pl.BlockSpec((blk, w), lambda i: (i, 0))
    const_spec = lambda shape: pl.BlockSpec(shape, lambda i: (0, 0))  # VMEM-resident

    raw_padded = pl.pallas_call(
        functools.partial(_organelle_kernel, use_pow=use_pow),
        out_shape=jax.ShapeDtypeStruct((padded, n_out_pad), jnp.float32),
        grid=grid,
        in_specs=[
            row_spec(n_input),                            # average
            row_spec(n_input),                            # numbers
            row_spec(1),                                  # cellvol
            const_spec((1, n_input)),                     # alpha
            const_spec((n_input, n_input * n_input)),     # rsel
            const_spec((n_input, n_input * n_input)),     # ssel
            const_spec((n_input, n_out_pad)),             # A.T (padded)
            const_spec((n_input * n_input, n_out_pad)),   # B flattened (padded)
            const_spec((1, n_out_pad)),                   # C (padded)
        ],
        out_specs=pl.BlockSpec((blk, n_out_pad), lambda i: (i, 0)),
        compiler_params=pltpu.CompilerParams(
            dimension_semantics=("parallel",)),
    )(average, numbers, cellvol, alpha2d, rsel, ssel, w_lin, w_bil, c_pad)

    raw = raw_padded[:batch, :n_output]
    # Global normalization is a cross-batch reduction; do the scalar divide in XLA
    # so the kernel's batch grid stays fully parallel (per review).
    return raw / jnp.sum(raw)


if __name__ == "__main__":
    n_input, n_output, batch = 8, 4, 16

    key = jax.random.PRNGKey(0)
    kx, ka, kb, kalpha = jax.random.split(key, 4)

    # Positive inputs so pow(average, alpha) is well defined.
    x = jax.random.uniform(kx, (batch, 2 * n_input + 1), dtype=jnp.float32,
                           minval=0.5, maxval=2.0)

    # Parameter init mirroring the torch __init__.
    A = jax.random.normal(ka, (n_output, n_input), dtype=jnp.float32)
    B = jax.random.normal(kb, (n_input, n_output, n_input), dtype=jnp.float32)
    C = jnp.zeros((n_output,), dtype=jnp.float32)
    alpha = jnp.ones((n_input,), dtype=jnp.float32)

    def reference(x, A, B, C, alpha):
        average = x[:, :n_input]
        numbers = x[:, -n_input - 1:-1]
        cellvol = x[:, -1:]
        org = numbers * jnp.power(average, alpha) / cellvol
        raw = (jnp.dot(org, A.T, precision='highest')
               + jnp.einsum('bi,ioj,bj->bo', org, B, org, precision='highest')
               + C)
        return raw / jnp.sum(raw)

    def check(out, ref, name):
        scale = float(jnp.max(jnp.abs(ref)))
        ok = jnp.allclose(out, ref, rtol=2e-3, atol=2e-3 * max(scale, 1e-6))
        assert bool(ok), (name, out, ref)

    # Default init (alpha == 1 fast path); block_batch=8 -> 2 grid tiles.
    out = organelle_classifier(x, A, B, C, alpha, block_batch=8)
    jax.block_until_ready(out)
    assert out.shape == (batch, n_output)
    check(out, reference(x, A, B, C, alpha), "alpha=1")

    # Non-trivial alpha exercises the exp/log pow path.
    alpha2 = jax.random.uniform(kalpha, (n_input,), dtype=jnp.float32,
                                minval=0.5, maxval=1.5)
    out2 = organelle_classifier(x, A, B, C, alpha2, block_batch=8)
    jax.block_until_ready(out2)
    check(out2, reference(x, A, B, C, alpha2), "alpha!=1")

    print("KERNEL_OK")
</pallas_src>

<mosaic_0001>
module attributes {stable_mosaic.version = 11 : i64} {
  func.func @_organelle_kernel(%arg0: i32, %arg1: memref<8x8xf32, #tpu.memory_space<vmem>>, %arg2: memref<8x8xf32, #tpu.memory_space<vmem>>, %arg3: memref<8x1xf32, #tpu.memory_space<vmem>>, %arg4: memref<1x8xf32, #tpu.memory_space<vmem>>, %arg5: memref<8x64xf32, #tpu.memory_space<vmem>>, %arg6: memref<8x64xf32, #tpu.memory_space<vmem>>, %arg7: memref<8x128xf32, #tpu.memory_space<vmem>>, %arg8: memref<64x128xf32, #tpu.memory_space<vmem>>, %arg9: memref<1x128xf32, #tpu.memory_space<vmem>>, %arg10: memref<8x128xf32, #tpu.memory_space<vmem>>) attributes {dimension_semantics = [#tpu.dimension_semantics<parallel>], iteration_bounds = array<i64: 2>, scalar_prefetch = 0 : i64, scratch_operands = 0 : i64, tpu.core_type = #tpu.core_type<tc>, window_params = [{transform_indices = @transform_0, window_bounds = array<i64: 8, 8>}, {transform_indices = @transform_1, window_bounds = array<i64: 8, 8>}, {transform_indices = @transform_2, window_bounds = array<i64: 8, 1>}, {pipeline_mode = #tpu.pipeline_mode<synchronous>, transform_indices = @transform_3, window_bounds = array<i64: 1, 8>}, {pipeline_mode = #tpu.pipeline_mode<synchronous>, transform_indices = @transform_4, window_bounds = array<i64: 8, 64>}, {pipeline_mode = #tpu.pipeline_mode<synchronous>, transform_indices = @transform_5, window_bounds = array<i64: 8, 64>}, {pipeline_mode = #tpu.pipeline_mode<synchronous>, transform_indices = @transform_6, window_bounds = array<i64: 8, 128>}, {pipeline_mode = #tpu.pipeline_mode<synchronous>, transform_indices = @transform_7, window_bounds = array<i64: 64, 128>}, {pipeline_mode = #tpu.pipeline_mode<synchronous>, transform_indices = @transform_8, window_bounds = array<i64: 1, 128>}, {transform_indices = @transform_9, window_bounds = array<i64: 8, 128>}]} {
    %c0 = arith.constant 0 : index
    %c0_0 = arith.constant 0 : index
    %0 = vector.load %arg1[%c0, %c0_0] : memref<8x8xf32, #tpu.memory_space<vmem>>, vector<8x8xf32>
    %c0_1 = arith.constant 0 : index
    %c0_2 = arith.constant 0 : index
    %1 = vector.load %arg2[%c0_1, %c0_2] : memref<8x8xf32, #tpu.memory_space<vmem>>, vector<8x8xf32>
    %c0_3 = arith.constant 0 : index
    %c0_4 = arith.constant 0 : index
    %2 = vector.load %arg3[%c0_3, %c0_4] : memref<8x1xf32, #tpu.memory_space<vmem>>, vector<8x1xf32>
    %3 = tpu.reciprocal %2 : vector<8x1xf32> -> vector<8x1xf32>
    %4 = arith.mulf %1, %0 : vector<8x8xf32>
    %5 = vector.broadcast %3 : vector<8x1xf32> to vector<8x8xf32>
    %6 = arith.mulf %4, %5 : vector<8x8xf32>
    %c0_5 = arith.constant 0 : index
    %c0_6 = arith.constant 0 : index
    %7 = vector.load %arg5[%c0_5, %c0_6] : memref<8x64xf32, #tpu.memory_space<vmem>>, vector<8x64xf32>
    %cst = arith.constant dense<0.000000e+00> : vector<8x64xf32>
    %8 = tpu.matmul %6, %7, %cst {dimension_numbers = #tpu.dot_dimension_numbers<[1], [0], [0], [1], [0, 0, 1, 1], [], []>} : vector<8x8xf32>, vector<8x64xf32>, vector<8x64xf32> -> vector<8x64xf32>
    %c0_7 = arith.constant 0 : index
    %c0_8 = arith.constant 0 : index
    %9 = vector.load %arg6[%c0_7, %c0_8] : memref<8x64xf32, #tpu.memory_space<vmem>>, vector<8x64xf32>
    %cst_9 = arith.constant dense<0.000000e+00> : vector<8x64xf32>
    %10 = tpu.matmul %6, %9, %cst_9 {dimension_numbers = #tpu.dot_dimension_numbers<[1], [0], [0], [1], [0, 0, 1, 1], [], []>} : vector<8x8xf32>, vector<8x64xf32>, vector<8x64xf32> -> vector<8x64xf32>
    %11 = arith.mulf %8, %10 : vector<8x64xf32>
    %c0_10 = arith.constant 0 : index
    %c0_11 = arith.constant 0 : index
    %12 = vector.load %arg7[%c0_10, %c0_11] : memref<8x128xf32, #tpu.memory_space<vmem>>, vector<8x128xf32>
    %cst_12 = arith.constant dense<0.000000e+00> : vector<8x128xf32>
    %13 = tpu.matmul %6, %12, %cst_12 {dimension_numbers = #tpu.dot_dimension_numbers<[1], [0], [0], [1], [0, 0, 1, 1], [], []>} : vector<8x8xf32>, vector<8x128xf32>, vector<8x128xf32> -> vector<8x128xf32>
    %c0_13 = arith.constant 0 : index
    %c0_14 = arith.constant 0 : index
    %14 = vector.load %arg8[%c0_13, %c0_14] : memref<64x128xf32, #tpu.memory_space<vmem>>, vector<64x128xf32>
    %cst_15 = arith.constant dense<0.000000e+00> : vector<8x128xf32>
    %15 = tpu.matmul %11, %14, %cst_15 {dimension_numbers = #tpu.dot_dimension_numbers<[1], [0], [0], [1], [0, 0, 1, 1], [], []>} : vector<8x64xf32>, vector<64x128xf32>, vector<8x128xf32> -> vector<8x128xf32>
    %16 = arith.addf %13, %15 : vector<8x128xf32>
    %c0_16 = arith.constant 0 : index
    %c0_17 = arith.constant 0 : index
    %17 = vector.load %arg9[%c0_16, %c0_17] : memref<1x128xf32, #tpu.memory_space<vmem>>, vector<1x128xf32>
    %18 = vector.broadcast %17 : vector<1x128xf32> to vector<8x128xf32>
    %19 = arith.addf %16, %18 : vector<8x128xf32>
    %c0_18 = arith.constant 0 : index
    %c0_19 = arith.constant 0 : index
    %20 = vector.load %arg10[%c0_18, %c0_19] : memref<8x128xf32, #tpu.memory_space<vmem>>, vector<8x128xf32>
    tpu.vector_store %arg10[%c0_18, %c0_19], %19 {strides = array<i32>} : memref<8x128xf32, #tpu.memory_space<vmem>>, vector<8x128xf32>,
    return
  }
  func.func @transform_0(%arg0: i32) -> (i32, i32) {
    %c0_i32 = arith.constant 0 : i32
    %c0_i32_0 = arith.constant 0 : i32
    return %arg0, %c0_i32 : i32, i32
  }
  func.func @transform_1(%arg0: i32) -> (i32, i32) {
    %c0_i32 = arith.constant 0 : i32
    %c0_i32_0 = arith.constant 0 : i32
    return %arg0, %c0_i32 : i32, i32
  }
  func.func @transform_2(%arg0: i32) -> (i32, i32) {
    %c0_i32 = arith.constant 0 : i32
    %c0_i32_0 = arith.constant 0 : i32
    return %arg0, %c0_i32 : i32, i32
  }
  func.func @transform_3(%arg0: i32) -> (i32, i32) {
    %c0_i32 = arith.constant 0 : i32
    %c0_i32_0 = arith.constant 0 : i32
    %c0_i32_1 = arith.constant 0 : i32
    return %c0_i32, %c0_i32_0 : i32, i32
  }
  func.func @transform_4(%arg0: i32) -> (i32, i32) {
    %c0_i32 = arith.constant 0 : i32
    %c0_i32_0 = arith.constant 0 : i32
    %c0_i32_1 = arith.constant 0 : i32
    return %c0_i32, %c0_i32_0 : i32, i32
  }
  func.func @transform_5(%arg0: i32) -> (i32, i32) {
    %c0_i32 = arith.constant 0 : i32
    %c0_i32_0 = arith.constant 0 : i32
    %c0_i32_1 = arith.constant 0 : i32
    return %c0_i32, %c0_i32_0 : i32, i32
  }
  func.func @transform_6(%arg0: i32) -> (i32, i32) {
    %c0_i32 = arith.constant 0 : i32
    %c0_i32_0 = arith.constant 0 : i32
    %c0_i32_1 = arith.constant 0 : i32
    return %c0_i32, %c0_i32_0 : i32, i32
  }
  func.func @transform_7(%arg0: i32) -> (i32, i32) {
    %c0_i32 = arith.constant 0 : i32
    %c0_i32_0 = arith.constant 0 : i32
    %c0_i32_1 = arith.constant 0 : i32
    return %c0_i32, %c0_i32_0 : i32, i32
  }
  func.func @transform_8(%arg0: i32) -> (i32, i32) {
    %c0_i32 = arith.constant 0 : i32
    %c0_i32_0 = arith.constant 0 : i32
    %c0_i32_1 = arith.constant 0 : i32
    return %c0_i32, %c0_i32_0 : i32, i32
  }
  func.func @transform_9(%arg0: i32) -> (i32, i32) {
    %c0_i32 = arith.constant 0 : i32
    %c0_i32_0 = arith.constant 0 : i32
    return %arg0, %c0_i32 : i32, i32
  }
}

</mosaic_0001>

<llo_original>
// kernel: tpu_custom_call.1
$region0: #{tpu_custom_call.1}
  #allocation0 [shape = 'u32[]', space=smem, size = 0x4, offset = 0x4, fixed_abs, tag = 'smem constant byte address 0x4 - core index']
  #allocation1 [shape = 'u32[72,128]{1,0:T(1,128)}', space=vmem, size = 0x9000, scoped, tag = 'internal scratch']
  %s0 = inlined_call_operand.vmem [shape: f32[16,8], index: 0, kind: input, shape index: {}]
  %s1 = inlined_call_operand.vmem [shape: f32[16,8], index: 1, kind: input, shape index: {}]
  %s2 = inlined_call_operand.vmem [shape: f32[16,1], index: 2, kind: input, shape index: {}]
  %s3 = inlined_call_operand.vmem [shape: f32[1,8], index: 3, kind: input, shape index: {}]
  %s4 = inlined_call_operand.vmem [shape: f32[8,64], index: 4, kind: input, shape index: {}]
  %s5 = inlined_call_operand.vmem [shape: f32[8,64], index: 5, kind: input, shape index: {}]
  %s6 = inlined_call_operand.vmem [shape: f32[8,128], index: 6, kind: input, shape index: {}]
  %s7 = inlined_call_operand.hbm [shape: f32[64,128], index: 7, kind: input, shape index: {}]
  %s8 = inlined_call_operand.vmem [shape: f32[1,128], index: 8, kind: input, shape index: {}]
  %s9 = inlined_call_operand.hbm [shape: f32[16,128], index: 9, kind: output, shape index: {}]
  %s10 = sld [smem:[#allocation0]]
  $region73: #{tpu_custom_call.1} parent=0
    _
  %s12 = ssub.s32 1, %s10
  %s13 = scalar_select 0, %s12, %s10
  $region1: #{tpu_custom_call.1} parent=0
    #allocation2 [shape = 'u8[32768]{0}', space=vmem, size = 0x8000, scoped, tag = 'input window, operand 7, single buffered']
    #allocation3 [shape = 's32[2]{0}', space=sflag, size = 0x8, scoped, tag = 'scoped memory for tpu_custom_call.1']
    #allocation4 [shape = 's32[2]{0}', space=sflag, size = 0x8, scoped, tag = 'scoped memory for tpu_custom_call.1']
    #allocation5 [shape = 'u8[8192]{0}', space=vmem, size = 0x2000, scoped, tag = 'output window, operand 0']
    %14 = vsyncpa [#allocation3], 0
    %15 = vsyncpa [#allocation4], 0
    %s16 = scalar_lea.sflag [#allocation4], 1
    %17 = vsyncpa %s16, 0
    loop: start=0, step=1, limit=4
    $region2: #{tpu_custom_call.1} parent=1 // loop_pre_header
      _
    $region3: #{tpu_custom_call.1} parent=1 // loop_header
      %s19 = sphi 0, %s23
      %p20 = scmp.ge.s32.totalorder %s19, 4
      %s29 = sphi 0, %s31
      %s32 = sphi 0, %s29
      %s33 = sphi 0, %s32
      %s49 = sphi 0, %s33
      %s55 = sphi 0, %s57
      %s58 = sphi 0, %s55
      %s59 = sphi 0, %s58
      %s75 = sphi 0, %s59
      %s81 = sphi 0, %s83
      %s84 = sphi 0, %s81
      %s85 = sphi 0, %s84
      %s101 = sphi 0, %s85
      %s105 = sphi 0, %s105
      %s107 = sphi 0, %s105
      %s108 = sphi 0, %s107
      %s122 = sphi 0, %s108
      %s126 = sphi 0, %s126
      %s128 = sphi 0, %s126
      %s129 = sphi 0, %s128
      %s143 = sphi 0, %s129
      %s147 = sphi 0, %s147
      %s149 = sphi 0, %s147
      %s150 = sphi 0, %s149
      %s164 = sphi 0, %s150
      %s168 = sphi 0, %s168
      %s170 = sphi 0, %s168
      %s171 = sphi 0, %s170
      %s185 = sphi 0, %s171
      %s189 = sphi 0, %s189
      %s191 = sphi 0, %s189
      %s192 = sphi 0, %s191
      %s206 = sphi 0, %s192
      %s210 = sphi 0, %s210
      %s212 = sphi 0, %s210
      %s213 = sphi 0, %s212
      %s227 = sphi 0, %s213
      %s233 = sphi 0, %s235
      %s236 = sphi 0, %s233
      %s237 = sphi 0, %s236
      %s253 = sphi 0, %s237
    $region4: #{tpu_custom_call.1} parent=1 // loop_header_branch
      %22 = sbr.rel (%p20) target = $region8
    $region5: #{tpu_custom_call.1} parent=1 // loop_body
      %s24 = ssub.s32 %s19, 1
      %s25 = ssub.s32 %s19, 2
      %s26 = sadd.s32 %s19, 1
      %s27 = ssub.s32 %s19, %s26
      %p28 = scmp.eq.s32.totalorder %s27, 0
      %s30 = sadd.s32 %s29, 1
      %s31 = scalar_select %p28, %s29, %s30
      %p34 = pneg %p28
      %p35 = scmp.eq.s32.totalorder %s19, 1
      %p36 = por %p34, %p35
      %p37 = scmp.ne.s32.totalorder %s29, %s32
      %p38 = scmp.eq.s32.totalorder %s19, 0
      %p39 = por %p37, %p38
      %p40 = scmp.ne.s32.totalorder %s29, %s32
      %p41 = scmp.eq.s32.totalorder %s24, 1
      %p42 = por %p40, %p41
      %p43 = scmp.ne.s32.totalorder %s32, %s33
      %p44 = scmp.eq.s32.totalorder %s24, 0
      %p45 = por %p43, %p44
      %p46 = scmp.ne.s32.totalorder %s32, %s33
      %p47 = scmp.eq.s32.totalorder %s25, 1
      %p48 = por %p46, %p47
      %p50 = scmp.ne.s32.totalorder %s33, %s49
      %p51 = scmp.eq.s32.totalorder %s25, 0
      %p52 = por %p50, %p51
      %s53 = ssub.s32 %s19, %s26
      %p54 = scmp.eq.s32.totalorder %s53, 0
      %s56 = sadd.s32 %s55, 1
      %s57 = scalar_select %p54, %s55, %s56
      %p60 = pneg %p54
      %p61 = scmp.eq.s32.totalorder %s19, 1
      %p62 = por %p60, %p61
      %p63 = scmp.ne.s32.totalorder %s55, %s58
      %p64 = scmp.eq.s32.totalorder %s19, 0
      %p65 = por %p63, %p64
      %p66 = scmp.ne.s32.totalorder %s55, %s58
      %p67 = scmp.eq.s32.totalorder %s24, 1
      %p68 = por %p66, %p67
      %p69 = scmp.ne.s32.totalorder %s58, %s59
      %p70 = scmp.eq.s32.totalorder %s24, 0
      %p71 = por %p69, %p70
      %p72 = scmp.ne.s32.totalorder %s58, %s59
      %p73 = scmp.eq.s32.totalorder %s25, 1
      %p74 = por %p72, %p73
      %p76 = scmp.ne.s32.totalorder %s59, %s75
      %p77 = scmp.eq.s32.totalorder %s25, 0
      %p78 = por %p76, %p77
      %s79 = ssub.s32 %s19, %s26
      %p80 = scmp.eq.s32.totalorder %s79, 0
      %s82 = sadd.s32 %s81, 1
      %s83 = scalar_select %p80, %s81, %s82
      %p86 = pneg %p80
      %p87 = scmp.eq.s32.totalorder %s19, 1
      %p88 = por %p86, %p87
      %p89 = scmp.ne.s32.totalorder %s81, %s84
      %p90 = scmp.eq.s32.totalorder %s19, 0
      %p91 = por %p89, %p90
      %p92 = scmp.ne.s32.totalorder %s81, %s84
      %p93 = scmp.eq.s32.totalorder %s24, 1
      %p94 = por %p92, %p93
      %p95 = scmp.ne.s32.totalorder %s84, %s85
      %p96 = scmp.eq.s32.totalorder %s24, 0
      %p97 = por %p95, %p96
      %p98 = scmp.ne.s32.totalorder %s84, %s85
      %p99 = scmp.eq.s32.totalorder %s25, 1
      %p100 = por %p98, %p99
      %p102 = scmp.ne.s32.totalorder %s85, %s101
      %p103 = scmp.eq.s32.totalorder %s25, 0
      %p104 = por %p102, %p103
      %s106 = sadd.s32 %s105, 1
      %p109 = scmp.eq.s32.totalorder %s19, 1
      %p110 = scmp.ne.s32.totalorder %s105, %s107
      %p111 = scmp.eq.s32.totalorder %s19, 0
      %p112 = por %p110, %p111
      %p113 = scmp.ne.s32.totalorder %s105, %s107
      %p114 = scmp.eq.s32.totalorder %s24, 1
      %p115 = por %p113, %p114
      %p116 = scmp.ne.s32.totalorder %s107, %s108
      %p117 = scmp.eq.s32.totalorder %s24, 0
      %p118 = por %p116, %p117
      %p119 = scmp.ne.s32.totalorder %s107, %s108
      %p120 = scmp.eq.s32.totalorder %s25, 1
      %p121 = por %p119, %p120
      %p123 = scmp.ne.s32.totalorder %s108, %s122
      %p124 = scmp.eq.s32.totalorder %s25, 0
      %p125 = por %p123, %p124
      %s127 = sadd.s32 %s126, 1
      %p130 = scmp.eq.s32.totalorder %s19, 1
      %p131 = scmp.ne.s32.totalorder %s126, %s128
      %p132 = scmp.eq.s32.totalorder %s19, 0
      %p133 = por %p131, %p132
      %p134 = scmp.ne.s32.totalorder %s126, %s128
      %p135 = scmp.eq.s32.totalorder %s24, 1
      %p136 = por %p134, %p135
      %p137 = scmp.ne.s32.totalorder %s128, %s129
      %p138 = scmp.eq.s32.totalorder %s24, 0
      %p139 = por %p137, %p138
      %p140 = scmp.ne.s32.totalorder %s128, %s129
      %p141 = scmp.eq.s32.totalorder %s25, 1
      %p142 = por %p140, %p141
      %p144 = scmp.ne.s32.totalorder %s129, %s143
      %p145 = scmp.eq.s32.totalorder %s25, 0
      %p146 = por %p144, %p145
      %s148 = sadd.s32 %s147, 1
      %p151 = scmp.eq.s32.totalorder %s19, 1
      %p152 = scmp.ne.s32.totalorder %s147, %s149
      %p153 = scmp.eq.s32.totalorder %s19, 0
      %p154 = por %p152, %p153
      %p155 = scmp.ne.s32.totalorder %s147, %s149
      %p156 = scmp.eq.s32.totalorder %s24, 1
      %p157 = por %p155, %p156
      %p158 = scmp.ne.s32.totalorder %s149, %s150
      %p159 = scmp.eq.s32.totalorder %s24, 0
      %p160 = por %p158, %p159
      %p161 = scmp.ne.s32.totalorder %s149, %s150
      %p162 = scmp.eq.s32.totalorder %s25, 1
      %p163 = por %p161, %p162
      %p165 = scmp.ne.s32.totalorder %s150, %s164
      %p166 = scmp.eq.s32.totalorder %s25, 0
      %p167 = por %p165, %p166
      %s169 = sadd.s32 %s168, 1
      %p172 = scmp.eq.s32.totalorder %s19, 1
      %p173 = scmp.ne.s32.totalorder %s168, %s170
      %p174 = scmp.eq.s32.totalorder %s19, 0
      %p175 = por %p173, %p174
      %p176 = scmp.ne.s32.totalorder %s168, %s170
      %p177 = scmp.eq.s32.totalorder %s24, 1
      %p178 = por %p176, %p177
      %p179 = scmp.ne.s32.totalorder %s170, %s171
      %p180 = scmp.eq.s32.totalorder %s24, 0
      %p181 = por %p179, %p180
      %p182 = scmp.ne.s32.totalorder %s170, %s171
      %p183 = scmp.eq.s32.totalorder %s25, 1
      %p184 = por %p182, %p183
      %p186 = scmp.ne.s32.totalorder %s171, %s185
      %p187 = scmp.eq.s32.totalorder %s25, 0
      %p188 = por %p186, %p187
      %s190 = sadd.s32 %s189, 1
      %p193 = scmp.eq.s32.totalorder %s19, 1
      %p194 = scmp.ne.s32.totalorder %s189, %s191
      %p195 = scmp.eq.s32.totalorder %s19, 0
      %p196 = por %p194, %p195
      %p197 = scmp.ne.s32.totalorder %s189, %s191
      %p198 = scmp.eq.s32.totalorder %s24, 1
      %p199 = por %p197, %p198
      %p200 = scmp.ne.s32.totalorder %s191, %s192
      %p201 = scmp.eq.s32.totalorder %s24, 0
      %p202 = por %p200, %p201
      %p203 = scmp.ne.s32.totalorder %s191, %s192
      %p204 = scmp.eq.s32.totalorder %s25, 1
      %p205 = por %p203, %p204
      %p207 = scmp.ne.s32.totalorder %s192, %s206
      %p208 = scmp.eq.s32.totalorder %s25, 0
      %p209 = por %p207, %p208
      %s211 = sadd.s32 %s210, 1
      %p214 = scmp.eq.s32.totalorder %s19, 1
      %p215 = scmp.ne.s32.totalorder %s210, %s212
      %p216 = scmp.eq.s32.totalorder %s19, 0
      %p217 = por %p215, %p216
      %p218 = scmp.ne.s32.totalorder %s210, %s212
      %p219 = scmp.eq.s32.totalorder %s24, 1
      %p220 = por %p218, %p219
      %p221 = scmp.ne.s32.totalorder %s212, %s213
      %p222 = scmp.eq.s32.totalorder %s24, 0
      %p223 = por %p221, %p222
      %p224 = scmp.ne.s32.totalorder %s212, %s213
      %p225 = scmp.eq.s32.totalorder %s25, 1
      %p226 = por %p224, %p225
      %p228 = scmp.ne.s32.totalorder %s213, %s227
      %p229 = scmp.eq.s32.totalorder %s25, 0
      %p230 = por %p228, %p229
      %s231 = ssub.s32 %s19, %s26
      %p232 = scmp.eq.s32.totalorder %s231, 0
      %s234 = sadd.s32 %s233, 1
      %s235 = scalar_select %p232, %s233, %s234
      %p238 = pneg %p232
      %p239 = scmp.eq.s32.totalorder %s19, 1
      %p240 = por %p238, %p239
      %p241 = scmp.ne.s32.totalorder %s233, %s236
      %p242 = scmp.eq.s32.totalorder %s19, 0
      %p243 = por %p241, %p242
      %p244 = scmp.ne.s32.totalorder %s233, %s236
      %p245 = scmp.eq.s32.totalorder %s24, 1
      %p246 = por %p244, %p245
      %p247 = scmp.ne.s32.totalorder %s236, %s237
      %p248 = scmp.eq.s32.totalorder %s24, 0
      %p249 = por %p247, %p248
      %p250 = scmp.ne.s32.totalorder %s236, %s237
      %p251 = scmp.eq.s32.totalorder %s25, 1
      %p252 = por %p250, %p251
      %p254 = scmp.ne.s32.totalorder %s237, %s253
      %p255 = scmp.eq.s32.totalorder %s25, 0
      %p256 = por %p254, %p255
      %p257 = scmp.le.s32.totalorder 1, %s19
      %p258 = scmp.lt.s32.totalorder %s19, 3
      %p259 = pnand %p257, %p258
      %p260 = pneg %p259
      // Predicated region
      $region9: #{tpu_custom_call.1} parent=5 // pred_check
        _
      $region10: #{tpu_custom_call.1} parent=5 // pred_check_branch
        %262 = sbr.rel (%p259) target = $region12
      $region11: #{tpu_custom_call.1} parent=5 // pred_region
        %s263 = ssub.s32 %s19, 1
        // Predicated region
        $region13: #{tpu_custom_call.1} parent=11 // pred_check
          %p264 = pneg %p118
        $region14: #{tpu_custom_call.1} parent=11 // pred_check_branch
          %266 = sbr.rel (%p264) target = $region16
        $region15: #{tpu_custom_call.1} parent=11 // pred_region
          _
        $region16: #{tpu_custom_call.1} parent=11 // pred_fallthru
          _
        // Predicated region
        $region17: #{tpu_custom_call.1} parent=11 // pred_check
          %p267 = pneg %p139
        $region18: #{tpu_custom_call.1} parent=11 // pred_check_branch
          %269 = sbr.rel (%p267) target = $region20
        $region19: #{tpu_custom_call.1} parent=11 // pred_region
          _
        $region20: #{tpu_custom_call.1} parent=11 // pred_fallthru
          _
        // Predicated region
        $region21: #{tpu_custom_call.1} parent=11 // pred_check
          %p270 = pneg %p160
        $region22: #{tpu_custom_call.1} parent=11 // pred_check_branch
          %272 = sbr.rel (%p270) target = $region24
        $region23: #{tpu_custom_call.1} parent=11 // pred_region
          _
        $region24: #{tpu_custom_call.1} parent=11 // pred_fallthru
          _
        // Predicated region
        $region25: #{tpu_custom_call.1} parent=11 // pred_check
          %p273 = pneg %p181
        $region26: #{tpu_custom_call.1} parent=11 // pred_check_branch
          %275 = sbr.rel (%p273) target = $region28
        $region27: #{tpu_custom_call.1} parent=11 // pred_region
          _
        $region28: #{tpu_custom_call.1} parent=11 // pred_fallthru
          _
        // Predicated region
        $region29: #{tpu_custom_call.1} parent=11 // pred_check
          %p276 = pneg %p202
        $region30: #{tpu_custom_call.1} parent=11 // pred_check_branch
          %278 = sbr.rel (%p276) target = $region32
        $region31: #{tpu_custom_call.1} parent=11 // pred_region
          %280 = vsyncadd [#allocation3], 0
          %s281 = sshll.u32 %s7, 4
          %s282 = int_to_ptr.hbm [resolvable:$true] %s281
          %s283 = sshll.u32 [#allocation2], 4
          %s284 = int_to_ptr.vmem [resolvable:$true] %s283
          %289 = dma.hbm_to_vmem [thread:$0]  %s282, 1024, %s284, [#allocation3], 128, 128, 8
        $region32: #{tpu_custom_call.1} parent=11 // pred_fallthru
          _
        // Predicated region
        $region33: #{tpu_custom_call.1} parent=11 // pred_check
          %p290 = pneg %p223
        $region34: #{tpu_custom_call.1} parent=11 // pred_check_branch
          %292 = sbr.rel (%p290) target = $region36
        $region35: #{tpu_custom_call.1} parent=11 // pred_region
          _
        $region36: #{tpu_custom_call.1} parent=11 // pred_fallthru
          _
      $region12: #{tpu_custom_call.1} parent=5 // pred_fallthru
        _
      %p293 = scmp.lt.s32.totalorder %s19, 2
      // Predicated region
      $region37: #{tpu_custom_call.1} parent=5 // pred_check
        %p294 = pneg %p293
      $region38: #{tpu_custom_call.1} parent=5 // pred_check_branch
        %296 = sbr.rel (%p294) target = $region40
      $region39: #{tpu_custom_call.1} parent=5 // pred_region
        // Predicated region
        $region41: #{tpu_custom_call.1} parent=39 // pred_check
          %p297 = pneg %p39
        $region42: #{tpu_custom_call.1} parent=39 // pred_check_branch
          %299 = sbr.rel (%p297) target = $region44
        $region43: #{tpu_custom_call.1} parent=39 // pred_region
          %p300 = scmp.lt.s32.totalorder %s19, 1
          %s301 = scalar_select %p300, %s19, 1
          %s302 = smul.addr %s301, 8
          %s303 = scalar_lea.vmem %s0, %s302
        $region44: #{tpu_custom_call.1} parent=39 // pred_fallthru
          _
        // Predicated region
        $region45: #{tpu_custom_call.1} parent=39 // pred_check
          %p304 = pneg %p65
        $region46: #{tpu_custom_call.1} parent=39 // pred_check_branch
          %306 = sbr.rel (%p304) target = $region48
        $region47: #{tpu_custom_call.1} parent=39 // pred_region
          %p307 = scmp.lt.s32.totalorder %s19, 1
          %s308 = scalar_select %p307, %s19, 1
          %s309 = smul.addr %s308, 8
          %s310 = scalar_lea.vmem %s1, %s309
        $region48: #{tpu_custom_call.1} parent=39 // pred_fallthru
          _
        // Predicated region
        $region49: #{tpu_custom_call.1} parent=39 // pred_check
          %p311 = pneg %p91
        $region50: #{tpu_custom_call.1} parent=39 // pred_check_branch
          %313 = sbr.rel (%p311) target = $region52
        $region51: #{tpu_custom_call.1} parent=39 // pred_region
          %p314 = scmp.lt.s32.totalorder %s19, 1
          %s315 = scalar_select %p314, %s19, 1
          %s316 = smul.addr %s315, 8
          %s317 = scalar_lea.vmem %s2, %s316
        $region52: #{tpu_custom_call.1} parent=39 // pred_fallthru
          _
      $region40: #{tpu_custom_call.1} parent=5 // pred_fallthru
        _
      %p318 = scmp.le.s32.totalorder 1, %s19
      %p319 = scmp.lt.s32.totalorder %s19, 3
      %p320 = pnand %p318, %p319
      %p321 = pneg %p320
      // Predicated region
      $region53: #{tpu_custom_call.1} parent=5 // pred_check
        _
      $region54: #{tpu_custom_call.1} parent=5 // pred_check_branch
        %323 = sbr.rel (%p320) target = $region56
      $region55: #{tpu_custom_call.1} parent=5 // pred_region
        %s324 = ssub.s32 %s19, 1
        // Predicated region
        $region57: #{tpu_custom_call.1} parent=55 // pred_check
          %p325 = pneg %p202
        $region58: #{tpu_custom_call.1} parent=55 // pred_check_branch
          %327 = sbr.rel (%p325) target = $region60
        $region59: #{tpu_custom_call.1} parent=55 // pred_region
          %329 = dma.done [#allocation3], 1024
        $region60: #{tpu_custom_call.1} parent=55 // pred_fallthru
          _
        %p330 = scmp.lt.s32.totalorder %s24, 1
        %s331 = scalar_select %p330, %s24, 1
        %s332 = smul.addr %s331, 8
        %s333 = scalar_lea.vmem %s0, %s332
        %p334 = pneg %p45
        %p335 = pneg %p42
        %p336 = scmp.lt.s32.totalorder %s24, 1
        %s337 = scalar_select %p336, %s24, 1
        %s338 = smul.addr %s337, 8
        %s339 = scalar_lea.vmem %s1, %s338
        %p340 = pneg %p71
        %p341 = pneg %p68
        %p342 = scmp.lt.s32.totalorder %s24, 1
        %s343 = scalar_select %p342, %s24, 1
        %s344 = smul.addr %s343, 8
        %s345 = scalar_lea.vmem %s2, %s344
        %p346 = pneg %p97
        %p347 = pneg %p94
        %p348 = pneg %p118
        %p349 = pneg %p115
        %p350 = pneg %p139
        %p351 = pneg %p136
        %p352 = pneg %p160
        %p353 = pneg %p157
        %p354 = pneg %p181
        %p355 = pneg %p178
        %p356 = pneg %p202
        %p357 = pneg %p199
        %p358 = pneg %p223
        %p359 = pneg %p220
        %p360 = pneg %p249
        %p361 = pneg %p246
        %s362 = sand.u32 %s236, 1
        %s363 = scalar_lea.sflag [#allocation4], %s362
        %s364 = sand.u32 %s236, 1
        %s365 = smul.addr %s364, 8
        %s366 = scalar_lea.vmem [#allocation5], %s365
        %p367 = scmp.lt.s32.totalorder %s24, 1
        %s368 = scalar_select %p367, %s24, 1
        %s369 = smul.addr %s368, 8
        %s370 = scalar_lea.vmem %s0, %s369
        %p371 = scmp.lt.s32.totalorder %s24, 1
        %s372 = scalar_select %p371, %s24, 1
        %s373 = smul.addr %s372, 8
        %s374 = scalar_lea.vmem %s1, %s373
        %p375 = scmp.lt.s32.totalorder %s24, 1
        %s376 = scalar_select %p375, %s24, 1
        %s377 = smul.addr %s376, 8
        %s378 = scalar_lea.vmem %s2, %s377
        %v379 = vld [vmem:[%s370] sm:$0xff]
        %v380 = vld [vmem:[%s374] sm:$0xff]
        %v381 = vld [vmem:[%s378] sm:$0xff]
        %v382 = vrcp.pop %v381
        %v383 = vmul.f32 %v381, %v382
        %v384 = vsub.f32 1.0, %v383
        %v385 = vmul.f32 %v382, %v384
        %v386 = vadd.f32 %v382, %v385
        %vm387 = vweird.f32 %v381
        %vm388 = vweird.f32 %v382
        %vm389 = vmor %vm387, %vm388
        %v390 = vsel %vm389, %v382, %v386
        %v391 = vand.u32 2147483647, %v381
        %vm392 = vcmp.eq.f32.partialorder %v391, 8.507059e+37
        %v393 = vand.u32 %v381, 2147483648
        %v394 = vor.u32 1.1754944e-38, %v393
        %v395 = vsel %vm392, %v394, %v390
        %v396 = vmul.f32 %v380, %v379
        %398 = vset.pattern.permute.xlu0 0
        %399 = vperm.xlu0 %398, %v395
        %v400 = vpop.permute.xlu0 %399
        %v402 = vmul.f32 %v396, %v400
        %v403 = vld [vmem:[%s4] sm:$0xff]
        %vm404 = vcmask 64512
        %v406 = vsel %vm404, %v402, 0
        %408 = vmatpush.msra.mxu0 0.0
        %409 = vmatpush.msra.mxu0 0.0
        %410 = vmatpush.msra.mxu0 0.0
        %411 = vmatpush.msra.mxu0 0.0
        %412 = vmatpush.msra.mxu0 0.0
        %413 = vmatpush.msra.mxu0 0.0
        %414 = vmatpush.msra.mxu0 0.0
        %415 = vmatpush.msra.mxu0 0.0
        %416 = vmatpush.msra.mxu0 0.0
        %417 = vmatpush.msra.mxu0 0.0
        %418 = vmatpush.msra.mxu0 0.0
        %419 = vmatpush.msra.mxu0 0.0
        %420 = vmatpush.msra.mxu0 0.0
        %421 = vmatpush.msra.mxu0 0.0
        %422 = vmatpush.msra.mxu0 0.0
        %423 = vmatpush.msra.mxu0 %v403
        %424 = vmatmul.f32.gmra.mxu0 %v406
        %v425 = vpop.f32.mrf.mxu0
        %v426 = vadd.f32 0.0, %v425
        %427 = vdwg.mxu0
        %v428 = vld [vmem:[%s5] sm:$0xff]
        %429 = vmatpush.msra.mxu0 0.0
        %430 = vmatpush.msra.mxu0 0.0
        %431 = vmatpush.msra.mxu0 0.0
        %432 = vmatpush.msra.mxu0 0.0
        %433 = vmatpush.msra.mxu0 0.0
        %434 = vmatpush.msra.mxu0 0.0
        %435 = vmatpush.msra.mxu0 0.0
        %436 = vmatpush.msra.mxu0 0.0
        %437 = vmatpush.msra.mxu0 0.0
        %438 = vmatpush.msra.mxu0 0.0
        %439 = vmatpush.msra.mxu0 0.0
        %440 = vmatpush.msra.mxu0 0.0
        %441 = vmatpush.msra.mxu0 0.0
        %442 = vmatpush.msra.mxu0 0.0
        %443 = vmatpush.msra.mxu0 0.0
        %444 = vmatpush.msra.mxu0 %v428
        %445 = vmatmul.f32.gmra.mxu0 %v406
        %v446 = vpop.f32.mrf.mxu0
        %v447 = vadd.f32 0.0, %v446
        %448 = vdwg.mxu0
        %v449 = vmul.f32 %v426, %v447
        %v450 = vld [vmem:[%s6] sm:$0xff]
        %v451 = vld [vmem:[#allocation2] sm:$0xff]
        %v452 = vld [vmem:[#allocation2 + $0x8] sm:$0xff]
        %v453 = vld [vmem:[#allocation2 + $0x10] sm:$0xff]
        %v454 = vld [vmem:[#allocation2 + $0x18] sm:$0xff]
        %v455 = vld [vmem:[#allocation2 + $0x20] sm:$0xff]
        %v456 = vld [vmem:[#allocation2 + $0x28] sm:$0xff]
        %v457 = vld [vmem:[#allocation2 + $0x30] sm:$0xff]
        %v458 = vld [vmem:[#allocation2 + $0x38] sm:$0xff]
        %vm459 = vcmask 523264
        %v461 = vsel %vm459, %v449, 0
        %463 = vmatpush.msra.mxu0 0.0
        %464 = vmatpush.msra.mxu0 0.0
        %465 = vmatpush.msra.mxu0 0.0
        %466 = vmatpush.msra.mxu0 0.0
        %467 = vmatpush.msra.mxu0 0.0
        %468 = vmatpush.msra.mxu0 0.0
        %469 = vmatpush.msra.mxu0 0.0
        %470 = vmatpush.msra.mxu0 0.0
        %471 = vmatpush.msra.mxu0 %v458
        %472 = vmatpush.msra.mxu0 %v457
        %473 = vmatpush.msra.mxu0 %v456
        %474 = vmatpush.msra.mxu0 %v455
        %475 = vmatpush.msra.mxu0 %v454
        %476 = vmatpush.msra.mxu0 %v453
        %477 = vmatpush.msra.mxu0 %v452
        %478 = vmatpush.msra.mxu0 %v451
        %479 = vmatmul.f32.gmra.mxu0 %v461
        %v480 = vpop.f32.mrf.mxu0
        %v481 = vadd.f32 0.0, %v480
        %482 = vdwg.mxu0
        %483 = vmatpush.msra.mxu0 0.0
        %484 = vmatpush.msra.mxu0 0.0
        %485 = vmatpush.msra.mxu0 0.0
        %486 = vmatpush.msra.mxu0 0.0
        %487 = vmatpush.msra.mxu0 0.0
        %488 = vmatpush.msra.mxu0 0.0
        %489 = vmatpush.msra.mxu0 0.0
        %490 = vmatpush.msra.mxu0 0.0
        %491 = vmatpush.msra.mxu0 0.0
        %492 = vmatpush.msra.mxu0 0.0
        %493 = vmatpush.msra.mxu0 0.0
        %494 = vmatpush.msra.mxu0 0.0
        %495 = vmatpush.msra.mxu0 0.0
        %496 = vmatpush.msra.mxu0 0.0
        %497 = vmatpush.msra.mxu0 0.0
        %498 = vmatpush.msra.mxu0 %v450
        %499 = vmatmul.f32.gmra.mxu0 %v406
        %v500 = vpop.f32.mrf.mxu0
        %v501 = vadd.f32 %v481, %v500
        %502 = vdwg.mxu0
        %v503 = vld [vmem:[%s8] sm:$0x1]
        %v505 = vperm.slane %v503, 0
        %v507 = vadd.f32 %v501, %v505
        %508 = vst [vmem:[%s366] sm:$0xff] %v507
        %s509 = sand.u32 %s236, 1
        %s510 = scalar_lea.sflag [#allocation4], %s509
        %s511 = sand.u32 %s236, 1
        %s512 = smul.addr %s511, 8
        %s513 = scalar_lea.vmem [#allocation5], %s512
        // Predicated region
        $region61: #{tpu_custom_call.1} parent=55 // pred_check
          %p514 = pneg %p246
        $region62: #{tpu_custom_call.1} parent=55 // pred_check_branch
          %516 = sbr.rel (%p514) target = $region64
        $region63: #{tpu_custom_call.1} parent=55 // pred_region
          %518 = vsyncadd %s510, 0
          %s519 = smul.addr %s24, 8
          %s520 = scalar_lea.hbm %s9, %s519
          %s522 = sshll.u32 %s513, 4
          %s523 = int_to_ptr.vmem [resolvable:$true] %s522
          %s524 = sshll.u32 %s520, 4
          %s525 = int_to_ptr.hbm [resolvable:$true] %s524
          %527 = dma.vmem_to_hbm [thread:$0]  %s523, 128, %s525, %s510
        $region64: #{tpu_custom_call.1} parent=55 // pred_fallthru
          _
      $region56: #{tpu_custom_call.1} parent=5 // pred_fallthru
        _
      %p528 = scmp.le.s32.totalorder 2, %s19
      // Predicated region
      $region65: #{tpu_custom_call.1} parent=5 // pred_check
        %p529 = pneg %p528
      $region66: #{tpu_custom_call.1} parent=5 // pred_check_branch
        %531 = sbr.rel (%p529) target = $region68
      $region67: #{tpu_custom_call.1} parent=5 // pred_region
        %s532 = ssub.s32 %s19, 2
        // Predicated region
        $region69: #{tpu_custom_call.1} parent=67 // pred_check
          %p533 = pneg %p252
        $region70: #{tpu_custom_call.1} parent=67 // pred_check_branch
          %535 = sbr.rel (%p533) target = $region72
        $region71: #{tpu_custom_call.1} parent=67 // pred_region
          %s536 = sand.u32 %s237, 1
          %s537 = scalar_lea.sflag [#allocation4], %s536
          %s538 = sand.u32 %s237, 1
          %s539 = smul.addr %s538, 8
          %s540 = scalar_lea.vmem [#allocation5], %s539
          %542 = dma.done %s537, 128
        $region72: #{tpu_custom_call.1} parent=67 // pred_fallthru
          _
      $region68: #{tpu_custom_call.1} parent=5 // pred_fallthru
        _
    $region6: #{tpu_custom_call.1} parent=1 // loop_footer
      %s23 = sadd.s32 1, %s19
    $region7: #{tpu_custom_call.1} parent=1 // loop_footer_branch
      %18 = sbr.rel target = $region3
    $region8: #{tpu_custom_call.1} parent=1 // loop_exit
      _
    %543 = vsyncpa [#allocation3], 1
    %s544 = scalar_lea.sflag [#allocation3], 1
    %545 = vsyncpa %s544, 1
    %546 = vsyncpa [#allocation4], 1
    %s547 = scalar_lea.sflag [#allocation4], 1
    %548 = vsyncpa %s547, 1

</llo_original>
